<compile_context>
chip_gen: v7x
topology: tpu7x:2x2x1
jax: 0.10.0
libtpu: 0.0.40
codegen_flags: <defaults>
</compile_context>

<pallas_src>
import functools

import jax
import jax.numpy as jnp
import numpy as np
from jax.experimental import pallas as pl
from jax.experimental.pallas import tpu as pltpu


_BINOMIAL = {
    1: [1.0],
    2: [1.0, 1.0],
    3: [1.0, 2.0, 1.0],
    4: [1.0, 3.0, 3.0, 1.0],
    5: [1.0, 4.0, 6.0, 4.0, 1.0],
    6: [1.0, 5.0, 10.0, 10.0, 5.0, 1.0],
    7: [1.0, 6.0, 15.0, 20.0, 15.0, 6.0, 1.0],
}


def _normalized_taps(filt_size):
    a = np.asarray(_BINOMIAL[filt_size], dtype=np.float64)
    return tuple(float(v) for v in (a / a.sum()))


def _pad_mode(pad_type):
    if pad_type in ("refl", "reflect"):
        return "reflect"
    if pad_type in ("repl", "replicate"):
        return "edge"
    if pad_type == "zero":
        return "constant"
    raise ValueError(f"pad type [{pad_type}] not recognized")


def _pad_sizes(filt_size, pad_off):
    p0 = int(1.0 * (filt_size - 1) / 2) + pad_off
    p1 = int(np.ceil(1.0 * (filt_size - 1) / 2)) + pad_off
    return p0, p1


def _vmem_capacity_bytes():
    """Generation-aware VMEM capacity; conservative (v7x per-TC) fallback."""
    try:
        info = pltpu.get_tpu_info()
        cap = getattr(info, "vmem_capacity_bytes", None)
        if cap:
            return int(cap)
    except Exception:
        pass
    return 64 * 1024 * 1024


def _blurpool_jax(x, *, pad_type, filt_size, stride, pad_off):
    """Pure-JAX strided-add formulation (fast path / fallback / reference)."""
    p0, p1 = _pad_sizes(filt_size, pad_off)
    mode = _pad_mode(pad_type)
    taps = _normalized_taps(filt_size)
    xp = jnp.pad(x, ((0, 0), (0, 0), (p0, p1)), mode=mode)
    t_pad = x.shape[-1] + p0 + p1
    l_out = (t_pad - filt_size) // stride + 1
    acc = None
    for k, tap in enumerate(taps):
        xs = xp[:, :, k : k + stride * (l_out - 1) + 1 : stride].astype(jnp.float32)
        term = tap * xs
        acc = term if acc is None else acc + term
    return acc.astype(x.dtype)


def _blurpool_kernel(x_ref, o_ref, *, taps, stride):
    # x_ref: VMEM (stride, row_tile, t_phase) -- de-interleaved stride phases
    # o_ref: VMEM (row_tile, l_out)           -- final output tile (full lane dim)
    l_out = o_ref.shape[-1]
    filt_size = len(taps)
    acc = None
    for phase in range(stride):            # static, small: unrolled at trace time
        ks = range(phase, filt_size, stride)   # taps that hit this phase plane
        if not len(ks):
            continue
        width = (max(ks) // stride) + l_out
        # One contiguous lane load per phase plane; shifted taps come from
        # static value slices (lane rotates on the XLU, hidden under the DMA).
        plane = x_ref[phase, :, pl.ds(0, width)].astype(jnp.float32)
        for k in ks:
            sh = k // stride
            term = taps[k] * plane[:, sh : sh + l_out]
            acc = term if acc is None else acc + term
    o_ref[...] = acc.astype(o_ref.dtype)


def blurpool1d(x, *, pad_type="reflect", filt_size=3, stride=2, pad_off=0,
               row_tile=None, min_pallas_bytes=1 << 20):
    """x: (N, C, T) -> (N, C, L_out). Matches torch BlurPool1D.forward."""
    assert x.ndim == 3, "expected (N, C, T)"
    n, c, t = x.shape
    p0, p1 = _pad_sizes(filt_size, pad_off)
    mode = _pad_mode(pad_type)

    # filt_size == 1: (optionally padded) strided subsample -- no kernel needed.
    if filt_size == 1:
        if pad_off == 0:
            return x[:, :, ::stride]
        xp = jnp.pad(x, ((0, 0), (0, 0), (p0, p1)), mode=mode)
        return xp[:, :, ::stride]

    itemsize = jnp.dtype(x.dtype).itemsize
    # Tiny-input fast path: launch + glue would dominate; XLA fuses this into
    # one pass. (Tests force the Pallas path with min_pallas_bytes=0.)
    if n * c * t * itemsize < min_pallas_bytes:
        return _blurpool_jax(x, pad_type=pad_type, filt_size=filt_size,
                             stride=stride, pad_off=pad_off)

    taps = _normalized_taps(filt_size)
    t_pad = t + p0 + p1
    l_out = (t_pad - filt_size) // stride + 1
    assert l_out > 0, "sequence too short for this filter/stride"
    rows = n * c
    max_shift = (filt_size - 1) // stride
    t_phase = max(-(-t_pad // stride), l_out + max_shift)

    # --- VMEM budgeting (generation aware) --------------------------------
    vmem_cap = _vmem_capacity_bytes()
    step_budget = vmem_cap // 8          # double-buffered peak ~= cap/4 (+scratch)
    vmem_limit = int(vmem_cap // 2)
    sub = {4: 8, 2: 16, 1: 32}.get(itemsize, 8)   # sublane granularity per dtype
    per_row_bytes = (stride * t_phase + l_out) * itemsize

    if per_row_bytes * min(rows, sub) > vmem_cap // 3:
        # TODO(synk): lane-axis tiling with a max_shift halo for audio-scale T
        # (needed on v7x's 64 MiB VMEM); fall back to plain XLA for now.
        return _blurpool_jax(x, pad_type=pad_type, filt_size=filt_size,
                             stride=stride, pad_off=pad_off)

    if row_tile is None:
        row_tile = max(sub, (step_budget // per_row_bytes) // sub * sub)
    if row_tile >= rows:
        row_tile = rows                  # single block: full dim needs no alignment
    else:
        row_tile = max(sub, (row_tile // sub) * sub)

    # --- glue (plain JAX; fuses into one producer pass): pad + phase split --
    xp = jnp.pad(x, ((0, 0), (0, 0), (p0, p1)), mode=mode).reshape(rows, t_pad)
    need = stride * t_phase
    if need > t_pad:
        xp = jnp.pad(xp, ((0, 0), (0, need - t_pad)))   # padding columns never read
    # De-interleave into `stride` phase planes so every tap is a contiguous
    # lane load in-kernel (Mosaic has no lane-strided vector loads).
    x_phases = jnp.stack([xp[:, p::stride] for p in range(stride)], axis=0)

    grid = (pl.cdiv(rows, row_tile),)    # ragged last block handled by Pallas
    out2d = pl.pallas_call(
        functools.partial(_blurpool_kernel, taps=taps, stride=stride),
        out_shape=jax.ShapeDtypeStruct((rows, l_out), x.dtype),
        grid=grid,
        in_specs=[
            pl.BlockSpec((stride, row_tile, t_phase), lambda i: (0, i, 0)),
        ],
        out_specs=pl.BlockSpec((row_tile, l_out), lambda i: (i, 0)),
        compiler_params=pltpu.CompilerParams(
            dimension_semantics=("parallel",),   # megacore / v7x dual-TC sharding
            vmem_limit_bytes=vmem_limit,
        ),
    )(x_phases)

    return out2d.reshape(n, c, l_out)


if __name__ == "__main__":
    k0, k1 = jax.random.split(jax.random.PRNGKey(0))

    # Small shape consistent with the module: batch=2, channels=4, length=16.
    N, C, T = 2, 4, 16
    x = jax.random.normal(k0, (N, C, T), dtype=jnp.float32)

    # Default config (filt=3, stride=2) plus larger filter and stride=3.
    for cfg in (dict(filt_size=3, stride=2),
                dict(filt_size=5, stride=2),
                dict(filt_size=3, stride=3)):
        out = blurpool1d(x, pad_type="reflect", pad_off=0, min_pallas_bytes=0, **cfg)
        out = jax.block_until_ready(out)
        ref = _blurpool_jax(x, pad_type="reflect", pad_off=0, **cfg)
        assert out.shape == ref.shape, (out.shape, ref.shape)
        np.testing.assert_allclose(np.asarray(out), np.asarray(ref),
                                   rtol=1e-5, atol=1e-5)
    assert blurpool1d(x, filt_size=3, stride=2, min_pallas_bytes=0).shape == (N, C, 8)

    # Multi-block ragged grid: rows = 3*37 = 111 with a forced 8-row tile
    # exercises the masked partial last block and non-128 lane-width stores.
    x2 = jax.random.normal(k1, (3, 37, 300), dtype=jnp.float32)
    out2 = blurpool1d(x2, filt_size=3, stride=2, min_pallas_bytes=0, row_tile=8)
    out2 = jax.block_until_ready(out2)
    ref2 = _blurpool_jax(x2, pad_type="reflect", filt_size=3, stride=2, pad_off=0)
    np.testing.assert_allclose(np.asarray(out2), np.asarray(ref2),
                               rtol=1e-5, atol=1e-5)

    # filt_size == 1 path (pure strided subsample).
    out1 = blurpool1d(x, filt_size=1, stride=2)
    np.testing.assert_allclose(np.asarray(out1), np.asarray(x[:, :, ::2]))

    print("KERNEL_OK")
</pallas_src>

<mosaic_0001>
module attributes {stable_mosaic.version = 11 : i64} {
  func.func @_blurpool_kernel(%arg0: i32, %arg1: memref<2x8x9xf32, #tpu.memory_space<vmem>>, %arg2: memref<8x8xf32, #tpu.memory_space<vmem>>) attributes {dimension_semantics = [#tpu.dimension_semantics<parallel>], iteration_bounds = array<i64: 1>, scalar_prefetch = 0 : i64, scratch_operands = 0 : i64, tpu.core_type = #tpu.core_type<tc>, window_params = [{transform_indices = @transform_0, window_bounds = array<i64: 2, 8, 9>}, {transform_indices = @transform_1, window_bounds = array<i64: 8, 8>}]} {
    %c0 = arith.constant 0 : index
    %c0_0 = arith.constant 0 : index
    %c0_1 = arith.constant 0 : index
    %0 = vector.load %arg1[%c0, %c0_0, %c0_1] : memref<2x8x9xf32, #tpu.memory_space<vmem>>, vector<1x8x9xf32>
    %1 = vector.shape_cast %0 : vector<1x8x9xf32> to vector<8x9xf32>
    %2 = vector.extract_strided_slice %1 {offsets = [0, 0], sizes = [8, 8], strides = [1, 1]} : vector<8x9xf32> to vector<8x8xf32>
    %cst = arith.constant 2.500000e-01 : f32
    %3 = vector.broadcast %cst : f32 to vector<8x8xf32>
    %4 = arith.mulf %3, %2 : vector<8x8xf32>
    %5 = vector.extract_strided_slice %1 {offsets = [0, 1], sizes = [8, 8], strides = [1, 1]} : vector<8x9xf32> to vector<8x8xf32>
    %cst_2 = arith.constant 2.500000e-01 : f32
    %6 = vector.broadcast %cst_2 : f32 to vector<8x8xf32>
    %7 = arith.mulf %6, %5 : vector<8x8xf32>
    %8 = arith.addf %4, %7 : vector<8x8xf32>
    %c1 = arith.constant 1 : index
    %c0_3 = arith.constant 0 : index
    %c0_4 = arith.constant 0 : index
    %9 = vector.load %arg1[%c1, %c0_3, %c0_4] : memref<2x8x9xf32, #tpu.memory_space<vmem>>, vector<1x8x8xf32>
    %10 = vector.shape_cast %9 : vector<1x8x8xf32> to vector<8x8xf32>
    %cst_5 = arith.constant 5.000000e-01 : f32
    %11 = vector.broadcast %cst_5 : f32 to vector<8x8xf32>
    %12 = arith.mulf %11, %10 : vector<8x8xf32>
    %13 = arith.addf %8, %12 : vector<8x8xf32>
    %c0_6 = arith.constant 0 : index
    %c0_7 = arith.constant 0 : index
    %14 = vector.load %arg2[%c0_6, %c0_7] : memref<8x8xf32, #tpu.memory_space<vmem>>, vector<8x8xf32>
    tpu.vector_store %arg2[%c0_6, %c0_7], %13 {strides = array<i32>} : memref<8x8xf32, #tpu.memory_space<vmem>>, vector<8x8xf32>,
    return
  }
  func.func @transform_0(%arg0: i32) -> (i32, i32, i32) {
    %c0_i32 = arith.constant 0 : i32
    %c0_i32_0 = arith.constant 0 : i32
    %c0_i32_1 = arith.constant 0 : i32
    return %c0_i32, %arg0, %c0_i32_0 : i32, i32, i32
  }
  func.func @transform_1(%arg0: i32) -> (i32, i32) {
    %c0_i32 = arith.constant 0 : i32
    %c0_i32_0 = arith.constant 0 : i32
    return %arg0, %c0_i32 : i32, i32
  }
}

</mosaic_0001>

<llo_original>
// kernel: tpu_custom_call.1
$region0: #{tpu_custom_call.1}
  #allocation0 [shape = 'u32[]', space=smem, size = 0x4, offset = 0x4, fixed_abs, tag = 'smem constant byte address 0x4 - core index']
  #allocation1 [shape = 'u32[144,128]{1,0:T(1,128)}', space=vmem, size = 0x12000, scoped, tag = 'internal scratch']
  %s0 = inlined_call_operand.hbm [shape: f32[2,8,9], index: 0, kind: input, shape index: {}]
  %s1 = inlined_call_operand.hbm [shape: f32[8,8], index: 1, kind: output, shape index: {}]
  %s2 = sld [smem:[#allocation0]]
  $region18: #{tpu_custom_call.1} parent=0
    _
  %s4 = ssub.s32 1, %s2
  %s5 = scalar_select 0, %s4, %s2
  $region1: #{tpu_custom_call.1} parent=0
    #allocation2 [shape = 'u8[8192]{0}', space=vmem, size = 0x2000, scoped, tag = 'input window, operand 0, single buffered']
    #allocation3 [shape = 's32[1]{0}', space=sflag, size = 0x4, scoped, tag = 'scoped memory for tpu_custom_call.1']
    #allocation4 [shape = 's32[1]{0}', space=sflag, size = 0x4, scoped, tag = 'scoped memory for tpu_custom_call.1']
    #allocation5 [shape = 'u8[4096]{0}', space=vmem, size = 0x1000, scoped, tag = 'output window, operand 0, single buffered']
    %6 = vsyncpa [#allocation3], 0
    %7 = vsyncpa [#allocation4], 0
    // Predicated region
    $region2: #{tpu_custom_call.1} parent=1 // pred_check
      _
    $region3: #{tpu_custom_call.1} parent=1 // pred_check_branch
      %9 = sbr.rel (0) target = $region5
    $region4: #{tpu_custom_call.1} parent=1 // pred_region
      %s11 = ssub.s32 256, 256
      %12 = vsyncadd [#allocation3], %s11
      %s13 = sshll.u32 [#allocation2], 4
      %s14 = int_to_ptr.vmem [resolvable:$true] %s13
      %19 = dma.hbm_to_vmem [thread:$0]  %s0, 256, %s14, [#allocation3], 128, 128, 8
    $region5: #{tpu_custom_call.1} parent=1 // pred_fallthru
      _
    // Predicated region
    $region6: #{tpu_custom_call.1} parent=1 // pred_check
      _
    $region7: #{tpu_custom_call.1} parent=1 // pred_check_branch
      %21 = sbr.rel (0) target = $region9
    $region8: #{tpu_custom_call.1} parent=1 // pred_region
      %22 = dma.done [#allocation3], 256
    $region9: #{tpu_custom_call.1} parent=1 // pred_fallthru
      _
    %v23 = vld [vmem:[#allocation2] sm:$0xff]
    %v24 = vmul.f32 %v23, 0.25
    %26 = vrot.lane.b32.xlu0 %v24, 127
    %v27 = vpop.permute.xlu0 %26
    %v29 = vadd.f32 %v24, %v27
    %s30 = scalar_lea.vmem [#allocation2], 8
    %v31 = vld [vmem:[%s30] sm:$0xff]
    %v32 = vmul.f32 %v31, 0.5
    %v33 = vadd.f32 %v29, %v32
    %vm34 = vcmask 64512
    %35 = vst.msk [vmem:[#allocation5] sm:$0xff] %vm34, %v33
    // Predicated region
    $region10: #{tpu_custom_call.1} parent=1 // pred_check
      _
    $region11: #{tpu_custom_call.1} parent=1 // pred_check_branch
      %37 = sbr.rel (0) target = $region13
    $region12: #{tpu_custom_call.1} parent=1 // pred_region
      %s39 = ssub.s32 128, 128
      %40 = vsyncadd [#allocation4], %s39
      %s42 = sshll.u32 [#allocation5], 4
      %s43 = int_to_ptr.vmem [resolvable:$true] %s42
      %45 = dma.vmem_to_hbm [thread:$0]  %s43, 128, %s1, [#allocation4]
    $region13: #{tpu_custom_call.1} parent=1 // pred_fallthru
      _
    // Predicated region
    $region14: #{tpu_custom_call.1} parent=1 // pred_check
      _
    $region15: #{tpu_custom_call.1} parent=1 // pred_check_branch
      %47 = sbr.rel (0) target = $region17
    $region16: #{tpu_custom_call.1} parent=1 // pred_region
      %48 = dma.done [#allocation4], 128
    $region17: #{tpu_custom_call.1} parent=1 // pred_fallthru
      _
    %49 = vsyncpa [#allocation3], 1
    %50 = vsyncpa [#allocation4], 1

</llo_original>
